<compile_context>
chip_gen: v7x
topology: tpu7x:2x2x1
jax: 0.10.0
libtpu: 0.0.40
codegen_flags: <defaults>
</compile_context>

<pallas_src>
import functools

import jax
import jax.numpy as jnp
import numpy as np
from jax.experimental import pallas as pl
from jax.experimental.pallas import tpu as pltpu

NUM_CH = 2                    # channel axis reduced by mean/max (x is (B, 2, 10))
SEQ_LEN = 10                  # per-channel feature length
FLAT = NUM_CH * SEQ_LEN       # 20 flattened features fed to Linear(20, 10)
NUM_CLASSES = 10              # Linear(20, 10) output


def _round_up(x, m):
    return (x + m - 1) // m * m


def _choose_tile(batch, tile_b):
    """Batch tile (sublane) size: 8-aligned, <= tile_b, >= 4 grid steps for big B."""
    if batch <= 8:
        return batch                              # single full-array block
    tb = min(tile_b, max(256, _round_up(pl.cdiv(batch, 4), 256)))
    return min(tb, _round_up(batch, 8))


def spatial_attention_kernel(x_ref, cw_ref, wt_ref, b_ref, out_ref):
    """One batch tile in the natural batch-major layout.

    x_ref  : (TB, 20)  flattened x = [channel-0 feats | channel-1 feats] (pipelined)
    cw_ref : (2, 20)   per-lane conv weights; row 0 scales (x1+x2), row 1 scales max
                       (the mean's 0.5 and tanh's 0.5 are already folded in)
    wt_ref : (20, 10)  0.5 * Linear(20,10).weight.T   (resident in VMEM)
    b_ref  : (1, 10)   Linear(20,10).bias
    out_ref: (TB, 10)
    """
    x = x_ref[...]                                               # (TB, 20)
    # Swap the two 10-lane channel halves so every lane also sees the other channel.
    x_swap = jnp.concatenate([x[:, SEQ_LEN:], x[:, :SEQ_LEN]], axis=-1)

    s = x + x_swap                           # (x1 + x2) replicated in both halves
    m = jnp.maximum(x, x_swap)               # max(x1, x2) replicated in both halves

    # z/2 = 0.25*wc[c,0]*(x1+x2) + 0.5*wc[c,1]*max ;  sigmoid(z) = 0.5*(1+tanh(z/2))
    zt = cw_ref[0:1, :] * s + cw_ref[1:2, :] * m                 # (TB, 20)
    t = jnp.tanh(zt)                                             # EUP slot

    u = x + t * x                            # = 2*sigmoid(z)*x ; 0.5 folded into wt

    out_ref[...] = (
        jnp.dot(u, wt_ref[...], preferred_element_type=jnp.float32) + b_ref[...]
    )


@functools.partial(jax.jit, static_argnames=("tile_b",))
def spatial_attention(x, wc, wl, bl, *, tile_b=1024):
    """x: (B, 2, 10) f32, wc: (2, 2) Conv1d weight, wl: (10, 20), bl: (10,) -> (B, 10)."""
    B = x.shape[0]
    x2d = x.astype(jnp.float32).reshape(B, FLAT)     # free view of the contiguous input

    # Fold every constant 0.5 into tiny weight tensors (exact power-of-two scalings).
    cw = jnp.stack([
        jnp.repeat(0.25 * wc[:, 0].astype(jnp.float32), SEQ_LEN),   # scales (x1 + x2)
        jnp.repeat(0.50 * wc[:, 1].astype(jnp.float32), SEQ_LEN),   # scales max(x1,x2)
    ])                                                              # (2, 20)
    wt = 0.5 * wl.astype(jnp.float32).T                             # (20, 10)
    b2 = bl.astype(jnp.float32).reshape(1, NUM_CLASSES)             # (1, 10)

    tb = _choose_tile(B, tile_b)
    grid = (pl.cdiv(B, tb),)            # partial last block handled by Pallas

    cost = pl.CostEstimate(
        flops=int(B) * (2 * FLAT * NUM_CLASSES + 7 * FLAT),
        transcendentals=int(B) * FLAT,
        bytes_accessed=int(B) * (FLAT + NUM_CLASSES) * 4
        + 4 * (2 * FLAT + FLAT * NUM_CLASSES + NUM_CLASSES),
    )

    return pl.pallas_call(
        spatial_attention_kernel,
        out_shape=jax.ShapeDtypeStruct((B, NUM_CLASSES), jnp.float32),
        grid=grid,
        in_specs=[
            pl.BlockSpec((tb, FLAT), lambda i: (i, 0)),            # x tile (pipelined)
            pl.BlockSpec((2, FLAT), lambda i: (0, 0)),             # conv lane weights
            pl.BlockSpec((FLAT, NUM_CLASSES), lambda i: (0, 0)),   # linear weight
            pl.BlockSpec((1, NUM_CLASSES), lambda i: (0, 0)),      # bias
        ],
        out_specs=pl.BlockSpec((tb, NUM_CLASSES), lambda i: (i, 0)),
        compiler_params=pltpu.CompilerParams(
            dimension_semantics=("parallel",),
        ),
        cost_estimate=cost,
    )(x2d, cw, wt, b2)


def init_params(key):
    """Deterministic synthetic parameters (PyTorch-style uniform init)."""
    kc, kw, kb = jax.random.split(key, 3)
    bc = 1.0 / float(np.sqrt(2.0))                    # Conv1d fan_in = 2*1
    wc = jax.random.uniform(kc, (2, 2), jnp.float32, -bc, bc)
    bound = 1.0 / float(np.sqrt(20.0))                # Linear(20, 10)
    wl = jax.random.uniform(kw, (NUM_CLASSES, FLAT), jnp.float32, -bound, bound)
    bl = jax.random.uniform(kb, (NUM_CLASSES,), jnp.float32, -bound, bound)
    return dict(wc=wc, wl=wl, bl=bl)


def reference_forward(x, p):
    """Pure-JAX transcription of SpatialAttention.forward."""
    x_mean = jnp.mean(x, axis=1, keepdims=True)
    x_max = jnp.max(x, axis=1, keepdims=True)
    x_sub = jnp.concatenate([x_mean, x_max], axis=1)             # (B, 2, 10)
    conv = jnp.einsum("oi,bil->bol", p["wc"], x_sub)             # Conv1d(2,2,1), no bias
    att = jax.nn.sigmoid(conv)
    y = att * x                                                  # (B, 2, 10)
    flat = y.reshape(y.shape[0], -1)                             # (B, 20)
    return flat @ p["wl"].T + p["bl"]                            # (B, 10)


if __name__ == "__main__":
    key = jax.random.PRNGKey(0)
    kx1, kx2, kp = jax.random.split(key, 3)
    params = init_params(kp)

    # Small shape consistent with the module: x is (batch=2, channels=2, L=10).
    B = 2
    x = jax.random.normal(kx1, (B, NUM_CH, SEQ_LEN), jnp.float32)
    out = jax.block_until_ready(
        spatial_attention(x, params["wc"], params["wl"], params["bl"]))
    ref = jax.block_until_ready(reference_forward(x, params))
    np.testing.assert_allclose(np.asarray(out), np.asarray(ref), rtol=1e-5, atol=1e-5)

    # Non-divisible batch: exercises the partial last block and a multi-step
    # "parallel" grid (no explicit padding, no wrapper transposes).
    B2 = 600
    x2 = jax.random.normal(kx2, (B2, NUM_CH, SEQ_LEN), jnp.float32)
    out2 = jax.block_until_ready(
        spatial_attention(x2, params["wc"], params["wl"], params["bl"]))
    ref2 = jax.block_until_ready(reference_forward(x2, params))
    np.testing.assert_allclose(np.asarray(out2), np.asarray(ref2), rtol=1e-5, atol=1e-5)

    print("KERNEL_OK")
</pallas_src>

<mosaic_0001>
module attributes {stable_mosaic.version = 11 : i64} {
  func.func @spatial_attention_kernel(%arg0: i32, %arg1: memref<2x20xf32, #tpu.memory_space<vmem>>, %arg2: memref<2x20xf32, #tpu.memory_space<vmem>>, %arg3: memref<20x10xf32, #tpu.memory_space<vmem>>, %arg4: memref<1x10xf32, #tpu.memory_space<vmem>>, %arg5: memref<2x10xf32, #tpu.memory_space<vmem>>) attributes {dimension_semantics = [#tpu.dimension_semantics<parallel>], iteration_bounds = array<i64: 1>, scalar_prefetch = 0 : i64, scratch_operands = 0 : i64, tpu.core_type = #tpu.core_type<tc>, window_params = [{transform_indices = @transform_0, window_bounds = array<i64: 2, 20>}, {pipeline_mode = #tpu.pipeline_mode<synchronous>, transform_indices = @transform_1, window_bounds = array<i64: 2, 20>}, {pipeline_mode = #tpu.pipeline_mode<synchronous>, transform_indices = @transform_2, window_bounds = array<i64: 20, 10>}, {pipeline_mode = #tpu.pipeline_mode<synchronous>, transform_indices = @transform_3, window_bounds = array<i64: 1, 10>}, {transform_indices = @transform_4, window_bounds = array<i64: 2, 10>}]} {
    %c0 = arith.constant 0 : index
    %c0_0 = arith.constant 0 : index
    %0 = vector.load %arg1[%c0, %c0_0] : memref<2x20xf32, #tpu.memory_space<vmem>>, vector<2x20xf32>
    %1 = vector.extract_strided_slice %0 {offsets = [0, 10], sizes = [2, 10], strides = [1, 1]} : vector<2x20xf32> to vector<2x10xf32>
    %2 = vector.extract_strided_slice %0 {offsets = [0, 0], sizes = [2, 10], strides = [1, 1]} : vector<2x20xf32> to vector<2x10xf32>
    %3 = tpu.concatenate %1, %2 in 1 : vector<2x10xf32>, vector<2x10xf32> -> vector<2x20xf32>
    %4 = arith.addf %0, %3 : vector<2x20xf32>
    %5 = arith.maximumf %0, %3 : vector<2x20xf32>
    %c0_1 = arith.constant 0 : index
    %c0_2 = arith.constant 0 : index
    %6 = vector.load %arg2[%c0_1, %c0_2] : memref<2x20xf32, #tpu.memory_space<vmem>>, vector<1x20xf32>
    %7 = vector.broadcast %6 : vector<1x20xf32> to vector<2x20xf32>
    %8 = arith.mulf %7, %4 : vector<2x20xf32>
    %c1 = arith.constant 1 : index
    %c0_3 = arith.constant 0 : index
    %9 = vector.load %arg2[%c1, %c0_3] : memref<2x20xf32, #tpu.memory_space<vmem>>, vector<1x20xf32>
    %10 = vector.broadcast %9 : vector<1x20xf32> to vector<2x20xf32>
    %11 = arith.mulf %10, %5 : vector<2x20xf32>
    %12 = arith.addf %8, %11 : vector<2x20xf32>
    %13 = math.tanh %12 : vector<2x20xf32>
    %14 = arith.mulf %13, %0 : vector<2x20xf32>
    %15 = arith.addf %0, %14 : vector<2x20xf32>
    %c0_4 = arith.constant 0 : index
    %c0_5 = arith.constant 0 : index
    %16 = vector.load %arg3[%c0_4, %c0_5] : memref<20x10xf32, #tpu.memory_space<vmem>>, vector<20x10xf32>
    %cst = arith.constant dense<0.000000e+00> : vector<2x10xf32>
    %17 = tpu.matmul %15, %16, %cst {dimension_numbers = #tpu.dot_dimension_numbers<[1], [0], [0], [1], [0, 0, 1, 1], [], []>} : vector<2x20xf32>, vector<20x10xf32>, vector<2x10xf32> -> vector<2x10xf32>
    %c0_6 = arith.constant 0 : index
    %c0_7 = arith.constant 0 : index
    %18 = vector.load %arg4[%c0_6, %c0_7] : memref<1x10xf32, #tpu.memory_space<vmem>>, vector<1x10xf32>
    %19 = vector.broadcast %18 : vector<1x10xf32> to vector<2x10xf32>
    %20 = arith.addf %17, %19 : vector<2x10xf32>
    %c0_8 = arith.constant 0 : index
    %c0_9 = arith.constant 0 : index
    %21 = vector.load %arg5[%c0_8, %c0_9] : memref<2x10xf32, #tpu.memory_space<vmem>>, vector<2x10xf32>
    tpu.vector_store %arg5[%c0_8, %c0_9], %20 {strides = array<i32>} : memref<2x10xf32, #tpu.memory_space<vmem>>, vector<2x10xf32>,
    return
  }
  func.func @transform_0(%arg0: i32) -> (i32, i32) {
    %c0_i32 = arith.constant 0 : i32
    %c0_i32_0 = arith.constant 0 : i32
    return %arg0, %c0_i32 : i32, i32
  }
  func.func @transform_1(%arg0: i32) -> (i32, i32) {
    %c0_i32 = arith.constant 0 : i32
    %c0_i32_0 = arith.constant 0 : i32
    %c0_i32_1 = arith.constant 0 : i32
    return %c0_i32, %c0_i32_0 : i32, i32
  }
  func.func @transform_2(%arg0: i32) -> (i32, i32) {
    %c0_i32 = arith.constant 0 : i32
    %c0_i32_0 = arith.constant 0 : i32
    %c0_i32_1 = arith.constant 0 : i32
    return %c0_i32, %c0_i32_0 : i32, i32
  }
  func.func @transform_3(%arg0: i32) -> (i32, i32) {
    %c0_i32 = arith.constant 0 : i32
    %c0_i32_0 = arith.constant 0 : i32
    %c0_i32_1 = arith.constant 0 : i32
    return %c0_i32, %c0_i32_0 : i32, i32
  }
  func.func @transform_4(%arg0: i32) -> (i32, i32) {
    %c0_i32 = arith.constant 0 : i32
    %c0_i32_0 = arith.constant 0 : i32
    return %arg0, %c0_i32 : i32, i32
  }
}

</mosaic_0001>

<llo_original>
// kernel: spatial_attention.1
$region0: #{spatial_attention.1}
  #allocation0 [shape = 'u32[]', space=smem, size = 0x4, offset = 0x4, fixed_abs, tag = 'smem constant byte address 0x4 - core index']
  #allocation1 [shape = 'u32[144,128]{1,0:T(1,128)}', space=vmem, size = 0x12000, scoped, tag = 'internal scratch']
  %s0 = inlined_call_operand.vmem [shape: f32[2,20], index: 0, kind: input, shape index: {}]
  %s1 = inlined_call_operand.vmem [shape: f32[2,20], index: 1, kind: input, shape index: {}]
  %s2 = inlined_call_operand.vmem [shape: f32[20,10], index: 2, kind: input, shape index: {}]
  %s3 = inlined_call_operand.vmem [shape: f32[1,10], index: 3, kind: input, shape index: {}]
  %s4 = inlined_call_operand.hbm [shape: f32[2,10], index: 4, kind: output, shape index: {}]
  %s5 = sld [smem:[#allocation0]]
  $region26: #{spatial_attention.1} parent=0
    _
  %s7 = ssub.s32 1, %s5
  %s8 = scalar_select 0, %s7, %s5
  $region1: #{spatial_attention.1} parent=0
    #allocation2 [shape = 'u8[1024]{0}', space=vmem, size = 0x400, scoped, tag = 'output window, operand 0, single buffered']
    #allocation3 [shape = 's32[1]{0}', space=sflag, size = 0x4, scoped, tag = 'scoped memory for spatial_attention.1']
    %9 = vsyncpa [#allocation3], 0
    // Predicated region
    $region2: #{spatial_attention.1} parent=1 // pred_check
      _
    $region3: #{spatial_attention.1} parent=1 // pred_check_branch
      %11 = sbr.rel (0) target = $region5
    $region4: #{spatial_attention.1} parent=1 // pred_region
      _
    $region5: #{spatial_attention.1} parent=1 // pred_fallthru
      _
    // Predicated region
    $region6: #{spatial_attention.1} parent=1 // pred_check
      _
    $region7: #{spatial_attention.1} parent=1 // pred_check_branch
      %13 = sbr.rel (0) target = $region9
    $region8: #{spatial_attention.1} parent=1 // pred_region
      _
    $region9: #{spatial_attention.1} parent=1 // pred_fallthru
      _
    // Predicated region
    $region10: #{spatial_attention.1} parent=1 // pred_check
      _
    $region11: #{spatial_attention.1} parent=1 // pred_check_branch
      %15 = sbr.rel (0) target = $region13
    $region12: #{spatial_attention.1} parent=1 // pred_region
      _
    $region13: #{spatial_attention.1} parent=1 // pred_fallthru
      _
    // Predicated region
    $region14: #{spatial_attention.1} parent=1 // pred_check
      _
    $region15: #{spatial_attention.1} parent=1 // pred_check_branch
      %17 = sbr.rel (0) target = $region17
    $region16: #{spatial_attention.1} parent=1 // pred_region
      _
    $region17: #{spatial_attention.1} parent=1 // pred_fallthru
      _
    %v18 = vld [vmem:[%s0] sm:$0x3]
    %20 = vrot.lane.b32.xlu0 %v18, 118
    %v21 = vpop.permute.xlu0 %20
    %23 = vrot.lane.b32.xlu0 %v18, 10
    %v24 = vpop.permute.xlu0 %23
    %vm26 = vcmask 80896
    %v27 = vsel %vm26, %v21, %v24
    %v28 = vadd.f32 %v18, %v27
    %v29 = vmax.f32 %v18, %v27
    %v30 = vld [vmem:[%s1] sm:$0x1]
    %v31 = vlaneseq
    %v32 = vshrl.u32 %v31, 7
    %v33 = vsub.s32 0, %v32
    %v34 = vrot.slane %v30, %v33
    %v35 = vmul.f32 %v34, %v28
    %v36 = vld [vmem:[%s1 + $0x1] sm:$0x1]
    %v37 = vlaneseq
    %v38 = vshrl.u32 %v37, 7
    %v39 = vsub.s32 0, %v38
    %v40 = vrot.slane %v36, %v39
    %v41 = vmul.f32 %v40, %v29
    %v42 = vadd.f32 %v35, %v41
    %v43 = vtanh.pop %v42
    %v44 = vmul.f32 %v43, %v18
    %v45 = vadd.f32 %v18, %v44
    %v46 = vld [vmem:[%s2] sm:$0xff]
    %v47 = vld [vmem:[%s2 + $0x8] sm:$0xff]
    %v48 = vld [vmem:[%s2 + $0x10] sm:$0xf]
    %v49 = vld [vmem:[%s3] sm:$0x1]
    %v51 = vlaneseq
    %v52 = vshrl.u32 %v51, 7
    %v53 = vsub.s32 0, %v52
    %v54 = vrot.slane %v49, %v53
    %vm56 = vcmask 162816
    %v58 = vsel %vm56, %v45, 0
    %vm60 = vcmask 1043456
    %v62 = vsel %vm60, %v48, 0
    %64 = vmatprep.subr.mxu0 0.0
    %65 = vmatpush1.msra.mxu0 %v46
    %66 = vmatprep.subr.mxu0 0.0
    %67 = vmatpush1.msra.mxu0 %v47
    %68 = vmatprep.subr.mxu0 0.0
    %69 = vmatpush1.msra.mxu0 %v62
    %70 = vmatprep.subr.mxu0 0.0
    %71 = vmatpush1.msra.mxu0 0.0
    %72 = vmatprep.subr.mxu0 0.0
    %73 = vmatpush1.msra.mxu0 0.0
    %74 = vmatprep.subr.mxu0 0.0
    %75 = vmatpush1.msra.mxu0 0.0
    %76 = vmatprep.subr.mxu0 0.0
    %77 = vmatpush1.msra.mxu0 0.0
    %78 = vmatprep.subr.mxu0 0.0
    %79 = vmatpush1.msra.mxu0 0.0
    %80 = vmatprep.subr.mxu0 0.0
    %81 = vmatpush1.msra.mxu0 0.0
    %82 = vmatprep.subr.mxu0 0.0
    %83 = vmatpush1.msra.mxu0 0.0
    %84 = vmatprep.subr.mxu0 0.0
    %85 = vmatpush1.msra.mxu0 0.0
    %86 = vmatprep.subr.mxu0 0.0
    %87 = vmatpush1.msra.mxu0 0.0
    %88 = vmatprep.subr.mxu0 0.0
    %89 = vmatpush1.msra.mxu0 0.0
    %90 = vmatprep.subr.mxu0 0.0
    %91 = vmatpush1.msra.mxu0 0.0
    %92 = vmatprep.subr.mxu0 0.0
    %93 = vmatpush1.msra.mxu0 0.0
    %94 = vmatprep.subr.mxu0 0.0
    %95 = vmatpush1.msra.mxu0 0.0
    %96 = vmatprep.subr.mxu0 0.0
    %97 = vmatpush1.msra.mxu0 0.0
    %98 = vmatprep.subr.mxu0 0.0
    %99 = vmatpush1.msra.mxu0 0.0
    %100 = vmatprep.subr.mxu0 0.0
    %101 = vmatpush1.msra.mxu0 0.0
    %102 = vmatprep.subr.mxu0 0.0
    %103 = vmatpush1.msra.mxu0 0.0
    %104 = vmatprep.subr.mxu0 0.0
    %105 = vmatpush1.msra.mxu0 0.0
    %106 = vmatprep.subr.mxu0 0.0
    %107 = vmatpush1.msra.mxu0 0.0
    %108 = vmatprep.subr.mxu0 0.0
    %109 = vmatpush1.msra.mxu0 0.0
    %110 = vmatprep.subr.mxu0 0.0
    %111 = vmatpush1.msra.mxu0 0.0
    %112 = vmatprep.subr.mxu0 0.0
    %113 = vmatpush1.msra.mxu0 0.0
    %114 = vmatprep.subr.mxu0 0.0
    %115 = vmatpush1.msra.mxu0 0.0
    %116 = vmatprep.subr.mxu0 0.0
    %117 = vmatpush1.msra.mxu0 0.0
    %118 = vmatprep.subr.mxu0 0.0
    %119 = vmatpush1.msra.mxu0 0.0
    %120 = vmatprep.subr.mxu0 0.0
    %121 = vmatpush1.msra.mxu0 0.0
    %122 = vmatprep.subr.mxu0 0.0
    %123 = vmatpush1.msra.mxu0 0.0
    %124 = vmatprep.subr.mxu0 0.0
    %125 = vmatpush1.msra.mxu0 0.0
    %126 = vmatprep.subr.mxu0 0.0
    %127 = vmatpush1.msra.mxu0 0.0
    %128 = vmatprep.mubr.f32.mxu0 0.0
    %129 = vmatmul.mubr.f32.gmra.mrb[0].mxu0 %v58
    %v130 = vpop.f32.mrb[0].mxu0
    %v131 = vadd.f32 %v54, %v130
    %v132 = vpop.f32.mrb[0].mxu0
    %133 = vdwg.mxu0
    %vm134 = vcmask 74752
    %135 = vst.msk [vmem:[#allocation2] sm:$0x3] %vm134, %v131
    // Predicated region
    $region18: #{spatial_attention.1} parent=1 // pred_check
      _
    $region19: #{spatial_attention.1} parent=1 // pred_check_branch
      %137 = sbr.rel (0) target = $region21
    $region20: #{spatial_attention.1} parent=1 // pred_region
      %s139 = ssub.s32 32, 32
      %140 = vsyncadd [#allocation3], %s139
      %s142 = sshll.u32 [#allocation2], 4
      %s143 = int_to_ptr.vmem [resolvable:$true] %s142
      %145 = dma.vmem_to_hbm [thread:$0]  %s143, 32, %s4, [#allocation3]
    $region21: #{spatial_attention.1} parent=1 // pred_fallthru
      _
    // Predicated region
    $region22: #{spatial_attention.1} parent=1 // pred_check
      _
    $region23: #{spatial_attention.1} parent=1 // pred_check_branch
      %147 = sbr.rel (0) target = $region25
    $region24: #{spatial_attention.1} parent=1 // pred_region
      %148 = dma.done [#allocation3], 32
    $region25: #{spatial_attention.1} parent=1 // pred_fallthru
      _
    %149 = vsyncpa [#allocation3], 1

</llo_original>
